<compile_context>
chip_gen: v5e
topology: v5e:2x2
jax: 0.10.0
libtpu: 0.0.40
codegen_flags: <defaults>
</compile_context>

<pallas_src>
from functools import partial

import jax
import jax.numpy as jnp
import numpy as np
from jax.experimental import pallas as pl
from jax.experimental.pallas import tpu as pltpu

LEAKY_SLOPE = 0.01  # torch.nn.functional.leaky_relu default negative_slope
EPS = 1e-12         # torch.nn.functional.normalize default eps
LANE = 128          # every feature axis padded to one full lane tile
NSTAGE = 4          # modulate stages: emb, post-fc1, post-fc2, post-fc3
P_LANES = NSTAGE * 4 * LANE


def _leaky_relu(x):
    return jnp.where(x > 0, x, LEAKY_SLOPE * x)


# -------------------- kernel 1: support set / AdaptiveNet (runs once) --------------------
def adaptive_kernel(xs_ref, ys_ref, wemb_ref, bias_ref, wcemb_ref,
                    wop_ref, bop_ref, p_ref):
    f32 = jnp.float32
    # support-set embeddings: single block-diagonal GEMM (bf16 in, f32 acc)
    emb = jnp.dot(xs_ref[...], wemb_ref[...],
                  preferred_element_type=f32) + bias_ref[0:1, :]
    # ctx_fc without a lane-axis concat: emb part (GEMM) + ys part (broadcast mul)
    h = jnp.dot(emb, wcemb_ref[...], preferred_element_type=f32)
    h = h + ys_ref[...] * bias_ref[6:7, :] + bias_ref[5:6, :]
    h = _leaky_relu(h)
    # TODO(synk): at production ns, grid the support batch and accumulate a sum
    # here (divide at the end) instead of a whole-array mean.
    m = jnp.mean(h, axis=0, keepdims=True)                          # (1, LANE)
    # out_layer against the lane-aligned-slab weight; padded lanes are exactly 0
    p = jnp.dot(m.astype(jnp.bfloat16), wop_ref[...],
                preferred_element_type=f32) + bop_ref[...]          # (1, 16*LANE)
    p_ref[...] = p


# -------------------- kernel 2: query path (gridded over query tiles) --------------------
def query_kernel(alpha_ref, p_ref, xq_ref, wemb_ref, wmlp_ref, bias_ref,
                 out_ref, *, rating_range):
    f32 = jnp.float32
    ones_lane = jnp.ones((LANE, LANE), f32)   # MXU-fused reduce + lane broadcast

    def l1n(x):
        # F.normalize(x, p=1, dim=-1): sum|x| and its lane-broadcast as one
        # 128x128 matmul (MXU) instead of an XLU reduce tree; EUP reciprocal.
        denom = jnp.maximum(
            jnp.dot(jnp.abs(x), ones_lane, preferred_element_type=f32), EPS)
        return x * pl.reciprocal(denom, approx=True)

    def modulate(x, stage, arow):
        base = stage * 4 * LANE                  # multiples of 128 -> aligned reads
        maxp = p_ref[:, base:base + LANE]
        minp = p_ref[:, base + LANE:base + 2 * LANE]
        mutp = jnp.maximum(p_ref[:, base + 2 * LANE:base + 3 * LANE], 0.0)  # F.relu(p[2])
        addp = p_ref[:, base + 3 * LANE:base + 4 * LANE]
        a0 = alpha_ref[arow, 0]
        a1 = alpha_ref[arow, 1]
        a2 = alpha_ref[arow, 2]
        a3 = alpha_ref[arow, 3]
        x1 = l1n(x)
        # a*l1n(f(x)) + (1-a)*x1  ==  x1 + a*(l1n(f(x)) - x1)
        x = x1 + a0 * (l1n(jnp.maximum(x, maxp)) - x1)
        x = x1 + a1 * (l1n(jnp.minimum(x, minp)) - x1)
        x = x1 + a2 * (l1n(x * mutp) - x1)
        x = x1 + a3 * (l1n(x + addp) - x1)
        return x

    # query embeddings: block-diagonal GEMM, bf16 in / f32 acc
    x = jnp.dot(xq_ref[...], wemb_ref[...],
                preferred_element_type=f32) + bias_ref[0:1, :]

    x = modulate(x, 0, 0)
    # NOTE: `x = x.normalize` in the PyTorch source is an attribute-access bug
    # (no call); treated as identity here.
    x = _leaky_relu(x)
    x = jnp.dot(x, wmlp_ref[0], preferred_element_type=f32) + bias_ref[1:2, :]

    x = modulate(x, 1, 1)
    x = _leaky_relu(x)
    x = jnp.dot(x, wmlp_ref[1], preferred_element_type=f32) + bias_ref[2:3, :]

    x = modulate(x, 2, 2)
    x = _leaky_relu(x)
    x = jnp.dot(x, wmlp_ref[2], preferred_element_type=f32) + bias_ref[3:4, :]

    x = modulate(x, 3, 2)   # reference reuses alpha row 2 for the last stage
    x = _leaky_relu(x)
    x = jnp.dot(x, wmlp_ref[3], preferred_element_type=f32) + bias_ref[4:5, :]
    # TODO(synk): lane-dense writeback at production nq (transpose (TB,1) into
    # dense 128-lane slabs); lane 0 holds the real linear_out column here.
    out_ref[...] = rating_range * jax.nn.sigmoid(x)


# -------------------- one-time parameter preprocessing --------------------
def prepare_params(params, cfg):
    """Pad / pack / re-lay-out parameters for the kernels (off the hot path)."""
    ife, ufe = cfg['ifeature_dim'], cfg['ufeature_dim']
    e = cfg['embedding_dim']
    h = cfg['hidden_units']
    d2e = 2 * e
    ctx = 8 * e
    sizes = [d2e, h[0], h[1], h[2]]
    offs = np.cumsum([0] + sizes[:-1]).tolist()
    S = sum(sizes)
    assert max(sizes) <= LANE and ctx <= LANE, "feature dims must fit one lane tile"

    def pad2(w, rows, cols):
        out = jnp.zeros((rows, cols), jnp.float32)
        return out.at[:w.shape[0], :w.shape[1]].set(w)

    F = ife + ufe
    # block-diagonal embedding weight [[Wi,0],[0,Wu]]; bf16 (feature GEMM path)
    w_emb = jnp.zeros((F, LANE), jnp.float32)
    w_emb = w_emb.at[:ife, :e].set(params['wi_t'])
    w_emb = w_emb.at[ife:, e:d2e].set(params['wu_t'])
    w_emb = w_emb.astype(jnp.bfloat16)

    # packed bias / small-vector stack (8, LANE):
    #   0: emb bias (bi|bu)  1: b1  2: b2  3: b3  4: bout
    #   5: ctx_fc bias       6: ctx_fc weight row for ys   7: unused (zeros)
    bias = jnp.zeros((8, LANE), jnp.float32)
    bias = bias.at[0, :e].set(params['bi'][0])
    bias = bias.at[0, e:d2e].set(params['bu'][0])
    bias = bias.at[1, :h[0]].set(params['b1'][0])
    bias = bias.at[2, :h[1]].set(params['b2'][0])
    bias = bias.at[3, :h[2]].set(params['b3'][0])
    bias = bias.at[4, :1].set(params['bout'][0])
    bias = bias.at[5, :ctx].set(params['bc'][0])
    bias = bias.at[6, :ctx].set(params['wc_t'][d2e])

    # packed MLP weight stack (4, LANE, LANE): [fc1, fc2, fc3, linear_out]
    wmlp = jnp.zeros((4, LANE, LANE), jnp.float32)
    wmlp = wmlp.at[0, :d2e, :h[0]].set(params['w1_t'])
    wmlp = wmlp.at[1, :h[0], :h[1]].set(params['w2_t'])
    wmlp = wmlp.at[2, :h[1], :h[2]].set(params['w3_t'])
    wmlp = wmlp.at[3, :h[2], :1].set(params['wout_t'])

    wc_emb = pad2(params['wc_t'][:d2e, :], LANE, LANE)

    # adp.out_layer re-laid out so every (stage, row) slab of p is lane-aligned
    # (slab index = stage*4 + row); padded lanes are exactly zero; stored bf16.
    wo = params['wo_adp_t']          # (ctx, 4*S)
    bo = params['bo_adp']            # (1, 4*S)
    wo_p = jnp.zeros((LANE, P_LANES), jnp.float32)
    bo_p = jnp.zeros((1, P_LANES), jnp.float32)
    for s in range(NSTAGE):
        for r in range(4):
            src = r * S + offs[s]
            dst = (s * 4 + r) * LANE
            wo_p = wo_p.at[:ctx, dst:dst + sizes[s]].set(wo[:, src:src + sizes[s]])
            bo_p = bo_p.at[:, dst:dst + sizes[s]].set(bo[:, src:src + sizes[s]])
    wo_p = wo_p.astype(jnp.bfloat16)

    return dict(
        w_emb=w_emb, bias=bias, wmlp=wmlp, wc_emb=wc_emb, wo_p=wo_p, bo_p=bo_p,
        # sigmoid of the 4x4 alpha parameter: one-time transform, fed via SMEM
        alpha_sig=jax.nn.sigmoid(params['alpha']).astype(jnp.float32),
    )


# -------------------- forward wrapper --------------------
def supernet_forward(prepped, xs, ys, xq, cfg):
    rating_range = float(cfg['rating_range_lfm'])
    nq, F = xq.shape
    xs_b = xs.astype(jnp.bfloat16)
    xq_b = xq.astype(jnp.bfloat16)
    ys_col = ys.reshape(-1, 1).astype(jnp.float32)

    vmem = pl.BlockSpec(memory_space=pltpu.MemorySpace.VMEM)
    smem = pl.BlockSpec(memory_space=pltpu.MemorySpace.SMEM)

    # ---- (1) support / AdaptiveNet path: runs ONCE per call (hoisted out of
    #      the query grid); produces the lane-aligned (1, 16*LANE) p slab ----
    p = pl.pallas_call(
        adaptive_kernel,
        out_shape=jax.ShapeDtypeStruct((1, P_LANES), jnp.float32),
        in_specs=[vmem] * 7,
        out_specs=vmem,
    )(xs_b, ys_col, prepped['w_emb'], prepped['bias'], prepped['wc_emb'],
      prepped['wo_p'], prepped['bo_p'])

    # ---- (2) query path: gridded over query-row tiles ----
    # TODO(synk): per-generation TB / vmem_limit_bytes tuning at production nq.
    tb = 256 if nq >= 256 else max(8, -(-nq // 8) * 8)
    nq_pad = -(-nq // tb) * tb
    if nq_pad != nq:
        xq_b = jnp.pad(xq_b, ((0, nq_pad - nq), (0, 0)))
    grid = (nq_pad // tb,)

    cp_kwargs = dict(dimension_semantics=("parallel",))
    est_bytes = 2 * tb * (F * 2 + LANE * 4) + int(prepped['wmlp'].size) * 4 + (1 << 20)
    if est_bytes > 12 * 1024 * 1024:
        cp_kwargs['vmem_limit_bytes'] = min(est_bytes + (8 << 20), 48 * 1024 * 1024)

    kern = partial(query_kernel, rating_range=rating_range)
    out_pad = pl.pallas_call(
        kern,
        out_shape=jax.ShapeDtypeStruct((nq_pad, LANE), jnp.float32),
        grid=grid,
        in_specs=[
            smem,                                               # alpha (4,4) scalars
            pl.BlockSpec((1, P_LANES), lambda i: (0, 0)),       # p (resident)
            pl.BlockSpec((tb, F), lambda i: (i, 0)),            # xq tile
            pl.BlockSpec((F, LANE), lambda i: (0, 0)),          # embedding weight
            pl.BlockSpec((4, LANE, LANE), lambda i: (0, 0, 0)), # MLP weight stack
            pl.BlockSpec((8, LANE), lambda i: (0, 0)),          # bias stack
        ],
        out_specs=pl.BlockSpec((tb, LANE), lambda i: (i, 0)),
        compiler_params=pltpu.CompilerParams(**cp_kwargs),
    )(prepped['alpha_sig'], p, xq_b, prepped['w_emb'], prepped['wmlp'],
      prepped['bias'])
    return out_pad[:nq, :1]   # lane 0 holds the real linear_out column


# -------------------- parameter init (matches torch init.normal std=0.01) --------------------
def init_params(key, cfg):
    ife, ufe = cfg['ifeature_dim'], cfg['ufeature_dim']
    e = cfg['embedding_dim']
    h = cfg['hidden_units']
    ctx = 8 * e
    p_dim = (2 * e + sum(h)) * 4
    shapes = {
        'wi_t': (ife, e), 'bi': (1, e),
        'wu_t': (ufe, e), 'bu': (1, e),
        'wc_t': (2 * e + 1, ctx), 'bc': (1, ctx),
        'wo_adp_t': (ctx, p_dim), 'bo_adp': (1, p_dim),
        'w1_t': (2 * e, h[0]), 'b1': (1, h[0]),
        'w2_t': (h[0], h[1]), 'b2': (1, h[1]),
        'w3_t': (h[1], h[2]), 'b3': (1, h[2]),
        'wout_t': (h[2], 1), 'bout': (1, 1),
        'alpha': (4, 4),
    }
    params = {}
    keys = jax.random.split(key, len(shapes))
    for k, (name, shp) in zip(keys, shapes.items()):
        params[name] = (0.01 * jax.random.normal(k, shp)).astype(jnp.float32)
    return params


# -------------------- pure-JAX reference (for validation) --------------------
def ref_forward(params, xs, ys, xq, cfg):
    ife = cfg['ifeature_dim']
    e = cfg['embedding_dim']
    h = cfg['hidden_units']

    def lin(x, w_t, b):
        return x @ w_t + b

    def l1n(x):
        return x / jnp.maximum(jnp.sum(jnp.abs(x), -1, keepdims=True), EPS)

    def lrelu(x):
        return jnp.where(x > 0, x, LEAKY_SLOPE * x)

    def emb_fn(x):
        return jnp.concatenate([lin(x[:, :ife], params['wi_t'], params['bi']),
                                lin(x[:, ife:], params['wu_t'], params['bu'])], axis=1)

    emb_s = emb_fn(xs)
    xcat = jnp.concatenate([emb_s, ys.reshape(-1, 1)], axis=1)
    ctxv = lrelu(lin(xcat, params['wc_t'], params['bc']))
    m = jnp.mean(ctxv, axis=0, keepdims=True)
    p = lin(m, params['wo_adp_t'], params['bo_adp']).reshape(4, -1)
    maxp, minp, mutp, addp = p[0], p[1], jnp.maximum(p[2], 0.0), p[3]
    alpha = jax.nn.sigmoid(params['alpha'])

    def modulate(x, mx, mn, mu, ad, a):
        x1 = l1n(x)
        x = a[0] * l1n(jnp.maximum(x, mx)) + (1 - a[0]) * x1
        x = a[1] * l1n(jnp.minimum(x, mn)) + (1 - a[1]) * x1
        x = a[2] * l1n(x * mu) + (1 - a[2]) * x1
        x = a[3] * l1n(x + ad) + (1 - a[3]) * x1
        return x

    x = emb_fn(xq)
    d2e = 2 * e
    d = 0
    x = modulate(x, maxp[:d2e], minp[:d2e], mutp[:d2e], addp[:d2e], alpha[0])
    x = lrelu(x)
    x = lin(x, params['w1_t'], params['b1'])
    d += d2e
    x = modulate(x, maxp[d:d + h[0]], minp[d:d + h[0]], mutp[d:d + h[0]], addp[d:d + h[0]], alpha[1])
    x = lrelu(x)
    x = lin(x, params['w2_t'], params['b2'])
    d += h[0]
    x = modulate(x, maxp[d:d + h[1]], minp[d:d + h[1]], mutp[d:d + h[1]], addp[d:d + h[1]], alpha[2])
    x = lrelu(x)
    x = lin(x, params['w3_t'], params['b3'])
    d += h[1]
    x = modulate(x, maxp[d:d + h[2]], minp[d:d + h[2]], mutp[d:d + h[2]], addp[d:d + h[2]], alpha[2])
    x = lrelu(x)
    x = lin(x, params['wout_t'], params['bout'])
    return float(cfg['rating_range_lfm']) * (1.0 / (1.0 + jnp.exp(-x)))


if __name__ == "__main__":
    cfg = dict(
        ifeature_dim=6,          # stands in for the hard-coded 3846 item-feature split
        ufeature_dim=4,
        embedding_dim=8,
        hidden_units=[16, 12, 8],
        rating_range_lfm=5.0,
        lr_i=1e-3,
    )
    key = jax.random.PRNGKey(0)
    kp, kxs, kys, kxq = jax.random.split(key, 4)
    params = init_params(kp, cfg)
    prepped = prepare_params(params, cfg)

    ns, nq = 8, 8
    feat = cfg['ifeature_dim'] + cfg['ufeature_dim']
    xs = jax.random.normal(kxs, (ns, feat), dtype=jnp.float32)
    ys = jax.random.uniform(kys, (ns,), dtype=jnp.float32, minval=0.0, maxval=5.0)
    xq = jax.random.normal(kxq, (nq, feat), dtype=jnp.float32)

    out = jax.block_until_ready(supernet_forward(prepped, xs, ys, xq, cfg))
    assert out.shape == (nq, 1)

    ref = jax.block_until_ready(ref_forward(params, xs, ys, xq, cfg))
    # bf16 feature path + approx-reciprocal L1 normalize -> looser tolerance
    # than the exact f32 reference.
    np.testing.assert_allclose(np.asarray(out), np.asarray(ref), rtol=2e-2, atol=2e-2)

    print("KERNEL_OK")
</pallas_src>

<mosaic_0001>
module attributes {stable_mosaic.version = 11 : i64} {
  func.func @adaptive_kernel(%arg0: memref<8x10xbf16, #tpu.memory_space<vmem>>, %arg1: memref<8x1xf32, #tpu.memory_space<vmem>>, %arg2: memref<10x128xbf16, #tpu.memory_space<vmem>>, %arg3: memref<8x128xf32, #tpu.memory_space<vmem>>, %arg4: memref<128x128xf32, #tpu.memory_space<vmem>>, %arg5: memref<128x2048xbf16, #tpu.memory_space<vmem>>, %arg6: memref<1x2048xf32, #tpu.memory_space<vmem>>, %arg7: memref<1x2048xf32, #tpu.memory_space<vmem>>) attributes {dimension_semantics = [], scalar_prefetch = 0 : i64, scratch_operands = 0 : i64, tpu.core_type = #tpu.core_type<tc>} {
    %c0 = arith.constant 0 : index
    %c0_0 = arith.constant 0 : index
    %0 = vector.load %arg0[%c0, %c0_0] : memref<8x10xbf16, #tpu.memory_space<vmem>>, vector<8x10xbf16>
    %c0_1 = arith.constant 0 : index
    %c0_2 = arith.constant 0 : index
    %1 = vector.load %arg2[%c0_1, %c0_2] : memref<10x128xbf16, #tpu.memory_space<vmem>>, vector<10x128xbf16>
    %cst = arith.constant dense<0.000000e+00> : vector<8x128xf32>
    %2 = tpu.matmul %0, %1, %cst {dimension_numbers = #tpu.dot_dimension_numbers<[1], [0], [0], [1], [0, 0, 1, 1], [], []>} : vector<8x10xbf16>, vector<10x128xbf16>, vector<8x128xf32> -> vector<8x128xf32>
    %c0_3 = arith.constant 0 : index
    %c0_4 = arith.constant 0 : index
    %3 = vector.load %arg3[%c0_3, %c0_4] : memref<8x128xf32, #tpu.memory_space<vmem>>, vector<1x128xf32>
    %4 = vector.broadcast %3 : vector<1x128xf32> to vector<8x128xf32>
    %5 = arith.addf %2, %4 : vector<8x128xf32>
    %c0_5 = arith.constant 0 : index
    %c0_6 = arith.constant 0 : index
    %6 = vector.load %arg4[%c0_5, %c0_6] : memref<128x128xf32, #tpu.memory_space<vmem>>, vector<128x128xf32>
    %cst_7 = arith.constant dense<0.000000e+00> : vector<8x128xf32>
    %7 = tpu.matmul %5, %6, %cst_7 {dimension_numbers = #tpu.dot_dimension_numbers<[1], [0], [0], [1], [0, 0, 1, 1], [], []>} : vector<8x128xf32>, vector<128x128xf32>, vector<8x128xf32> -> vector<8x128xf32>
    %c0_8 = arith.constant 0 : index
    %c0_9 = arith.constant 0 : index
    %8 = vector.load %arg1[%c0_8, %c0_9] : memref<8x1xf32, #tpu.memory_space<vmem>>, vector<8x1xf32>
    %c6 = arith.constant 6 : index
    %c0_10 = arith.constant 0 : index
    %9 = vector.load %arg3[%c6, %c0_10] : memref<8x128xf32, #tpu.memory_space<vmem>>, vector<1x128xf32>
    %10 = vector.broadcast %8 : vector<8x1xf32> to vector<8x128xf32>
    %11 = vector.broadcast %9 : vector<1x128xf32> to vector<8x128xf32>
    %12 = arith.mulf %10, %11 : vector<8x128xf32>
    %13 = arith.addf %7, %12 : vector<8x128xf32>
    %c5 = arith.constant 5 : index
    %c0_11 = arith.constant 0 : index
    %14 = vector.load %arg3[%c5, %c0_11] : memref<8x128xf32, #tpu.memory_space<vmem>>, vector<1x128xf32>
    %15 = vector.broadcast %14 : vector<1x128xf32> to vector<8x128xf32>
    %16 = arith.addf %13, %15 : vector<8x128xf32>
    %cst_12 = arith.constant 0.000000e+00 : f32
    %17 = vector.broadcast %cst_12 : f32 to vector<8x128xf32>
    %18 = arith.cmpf ogt, %16, %17 : vector<8x128xf32>
    %cst_13 = arith.constant 0.00999999977 : f32
    %19 = vector.broadcast %cst_13 : f32 to vector<8x128xf32>
    %20 = arith.mulf %19, %16 : vector<8x128xf32>
    %21 = arith.select %18, %16, %20 : vector<8x128xi1>, vector<8x128xf32>
    %cst_14 = arith.constant dense<0.000000e+00> : vector<128xf32>
    %22 = vector.multi_reduction <add>, %21, %cst_14 [0] : vector<8x128xf32> to vector<128xf32>
    %23 = vector.shape_cast %22 : vector<128xf32> to vector<1x128xf32>
    %cst_15 = arith.constant 8.000000e+00 : f32
    %24 = vector.broadcast %cst_15 : f32 to vector<1x128xf32>
    %25 = arith.divf %23, %24 : vector<1x128xf32>
    %26 = arith.truncf %25 : vector<1x128xf32> to vector<1x128xbf16>
    %c0_16 = arith.constant 0 : index
    %c0_17 = arith.constant 0 : index
    %27 = vector.load %arg5[%c0_16, %c0_17] : memref<128x2048xbf16, #tpu.memory_space<vmem>>, vector<128x2048xbf16>
    %cst_18 = arith.constant dense<0.000000e+00> : vector<1x2048xf32>
    %28 = tpu.matmul %26, %27, %cst_18 {dimension_numbers = #tpu.dot_dimension_numbers<[1], [0], [0], [1], [0, 0, 1, 1], [], []>} : vector<1x128xbf16>, vector<128x2048xbf16>, vector<1x2048xf32> -> vector<1x2048xf32>
    %c0_19 = arith.constant 0 : index
    %c0_20 = arith.constant 0 : index
    %29 = vector.load %arg6[%c0_19, %c0_20] : memref<1x2048xf32, #tpu.memory_space<vmem>>, vector<1x2048xf32>
    %30 = arith.addf %28, %29 : vector<1x2048xf32>
    %c0_21 = arith.constant 0 : index
    %c0_22 = arith.constant 0 : index
    %31 = vector.load %arg7[%c0_21, %c0_22] : memref<1x2048xf32, #tpu.memory_space<vmem>>, vector<1x2048xf32>
    tpu.vector_store %arg7[%c0_21, %c0_22], %30 {strides = array<i32>} : memref<1x2048xf32, #tpu.memory_space<vmem>>, vector<1x2048xf32>,
    return
  }
}

</mosaic_0001>

<llo_original>
// kernel: tpu_custom_call.1
$region0: #{tpu_custom_call.1}
  #allocation0 [shape = 'u32[]', space=smem, size = 0x4, offset = 0x4, fixed_abs, tag = 'smem constant byte address 0x4 - core index']
  #allocation1 [shape = 'u32[72,128]{1,0:T(1,128)}', space=vmem, size = 0x9000, scoped, tag = 'internal scratch']
  %s0 = inlined_call_operand.hbm [shape: bf16[8,10], index: 0, kind: input, shape index: {}]
  %s1 = inlined_call_operand.vmem [shape: f32[8,1], index: 1, kind: input, shape index: {}]
  %s2 = inlined_call_operand.vmem [shape: bf16[10,128], index: 2, kind: input, shape index: {}]
  %s3 = inlined_call_operand.hbm [shape: f32[8,128], index: 3, kind: input, shape index: {}]
  %s4 = inlined_call_operand.hbm [shape: f32[128,128], index: 4, kind: input, shape index: {}]
  %s5 = inlined_call_operand.hbm [shape: bf16[128,2048], index: 5, kind: input, shape index: {}]
  %s6 = inlined_call_operand.hbm [shape: f32[1,2048], index: 6, kind: input, shape index: {}]
  %s7 = inlined_call_operand.hbm [shape: f32[1,2048], index: 7, kind: output, shape index: {}]
  %s8 = sld [smem:[#allocation0]]
  $region58: #{tpu_custom_call.1} parent=0
    _
  %s10 = ssub.s32 1, %s8
  %s11 = scalar_select 0, %s10, %s8
  $region1: #{tpu_custom_call.1} parent=0
    #allocation2 [shape = 'u8[2048]{0}', space=vmem, size = 0x800, scoped, tag = 'input window, operand 0, single buffered']
    #allocation3 [shape = 's32[1]{0}', space=sflag, size = 0x4, scoped, tag = 'scoped memory for tpu_custom_call.1']
    #allocation4 [shape = 's32[1]{0}', space=sflag, size = 0x4, scoped, tag = 'scoped memory for tpu_custom_call.1']
    #allocation5 [shape = 'u8[4096]{0}', space=vmem, size = 0x1000, scoped, tag = 'input window, operand 3, single buffered']
    #allocation6 [shape = 's32[1]{0}', space=sflag, size = 0x4, scoped, tag = 'scoped memory for tpu_custom_call.1']
    #allocation7 [shape = 'u8[65536]{0}', space=vmem, size = 0x10000, scoped, tag = 'input window, operand 4, single buffered']
    #allocation8 [shape = 'u8[524288]{0}', space=vmem, size = 0x80000, scoped, tag = 'input window, operand 5, single buffered']
    #allocation9 [shape = 's32[1]{0}', space=sflag, size = 0x4, scoped, tag = 'scoped memory for tpu_custom_call.1']
    #allocation10 [shape = 'u8[8192]{0}', space=vmem, size = 0x2000, scoped, tag = 'input window, operand 6, single buffered']
    #allocation11 [shape = 'u8[8192]{0}', space=vmem, size = 0x2000, scoped, tag = 'output window, operand 0, single buffered']
    %12 = vsyncpa [#allocation3], 0
    %13 = vsyncpa [#allocation6], 0
    %14 = vsyncpa [#allocation9], 0
    %15 = vsyncpa [#allocation4], 0
    // Predicated region
    $region2: #{tpu_custom_call.1} parent=1 // pred_check
      _
    $region3: #{tpu_custom_call.1} parent=1 // pred_check_branch
      %17 = sbr.rel (0) target = $region5
    $region4: #{tpu_custom_call.1} parent=1 // pred_region
      %19 = vsyncadd [#allocation3], 0
      %s21 = sshll.u32 %s0, 4
      %s22 = int_to_ptr.hbm [resolvable:$true] %s21
      %s23 = sshll.u32 [#allocation2], 4
      %s24 = int_to_ptr.vmem [resolvable:$true] %s23
      %26 = dma.hbm_to_vmem [thread:$0]  %s22, 64, %s24, [#allocation3]
    $region5: #{tpu_custom_call.1} parent=1 // pred_fallthru
      _
    // Predicated region
    $region6: #{tpu_custom_call.1} parent=1 // pred_check
      _
    $region7: #{tpu_custom_call.1} parent=1 // pred_check_branch
      %28 = sbr.rel (0) target = $region9
    $region8: #{tpu_custom_call.1} parent=1 // pred_region
      _
    $region9: #{tpu_custom_call.1} parent=1 // pred_fallthru
      _
    // Predicated region
    $region10: #{tpu_custom_call.1} parent=1 // pred_check
      _
    $region11: #{tpu_custom_call.1} parent=1 // pred_check_branch
      %30 = sbr.rel (0) target = $region13
    $region12: #{tpu_custom_call.1} parent=1 // pred_region
      _
    $region13: #{tpu_custom_call.1} parent=1 // pred_fallthru
      _
    // Predicated region
    $region14: #{tpu_custom_call.1} parent=1 // pred_check
      _
    $region15: #{tpu_custom_call.1} parent=1 // pred_check_branch
      %32 = sbr.rel (0) target = $region17
    $region16: #{tpu_custom_call.1} parent=1 // pred_region
      %34 = vsyncadd [#allocation6], 0
      %s36 = sshll.u32 %s3, 4
      %s37 = int_to_ptr.hbm [resolvable:$true] %s36
      %s38 = sshll.u32 [#allocation5], 4
      %s39 = int_to_ptr.vmem [resolvable:$true] %s38
      %41 = dma.hbm_to_vmem [thread:$0]  %s37, 128, %s39, [#allocation6]
    $region17: #{tpu_custom_call.1} parent=1 // pred_fallthru
      _
    // Predicated region
    $region18: #{tpu_custom_call.1} parent=1 // pred_check
      _
    $region19: #{tpu_custom_call.1} parent=1 // pred_check_branch
      %43 = sbr.rel (0) target = $region21
    $region20: #{tpu_custom_call.1} parent=1 // pred_region
      %45 = vsyncadd [#allocation6], 0
      %s46 = sshll.u32 %s4, 4
      %s47 = int_to_ptr.hbm [resolvable:$true] %s46
      %s48 = sshll.u32 [#allocation7], 4
      %s49 = int_to_ptr.vmem [resolvable:$true] %s48
      %54 = dma.hbm_to_vmem [thread:$0]  %s47, 2048, %s49, [#allocation6], 128, 128, 8
    $region21: #{tpu_custom_call.1} parent=1 // pred_fallthru
      _
    // Predicated region
    $region22: #{tpu_custom_call.1} parent=1 // pred_check
      _
    $region23: #{tpu_custom_call.1} parent=1 // pred_check_branch
      %56 = sbr.rel (0) target = $region25
    $region24: #{tpu_custom_call.1} parent=1 // pred_region
      %58 = vsyncadd [#allocation9], 0
      %s59 = sshll.u32 %s5, 4
      %s60 = int_to_ptr.hbm [resolvable:$true] %s59
      %s61 = sshll.u32 [#allocation8], 4
      %s62 = int_to_ptr.vmem [resolvable:$true] %s61
      %67 = dma.hbm_to_vmem [thread:$0]  %s60, 16384, %s62, [#allocation9], 1024, 1024, 64
    $region25: #{tpu_custom_call.1} parent=1 // pred_fallthru
      _
    // Predicated region
    $region26: #{tpu_custom_call.1} parent=1 // pred_check
      _
    $region27: #{tpu_custom_call.1} parent=1 // pred_check_branch
      %69 = sbr.rel (0) target = $region29
    $region28: #{tpu_custom_call.1} parent=1 // pred_region
      %71 = vsyncadd [#allocation9], 0
      %s73 = sshll.u32 %s6, 4
      %s74 = int_to_ptr.hbm [resolvable:$true] %s73
      %s75 = sshll.u32 [#allocation10], 4
      %s76 = int_to_ptr.vmem [resolvable:$true] %s75
      %78 = dma.hbm_to_vmem [thread:$0]  %s74, 256, %s76, [#allocation9]
    $region29: #{tpu_custom_call.1} parent=1 // pred_fallthru
      _
    // Predicated region
    $region30: #{tpu_custom_call.1} parent=1 // pred_check
      _
    $region31: #{tpu_custom_call.1} parent=1 // pred_check_branch
      %80 = sbr.rel (0) target = $region33
    $region32: #{tpu_custom_call.1} parent=1 // pred_region
      %82 = dma.done [#allocation3], 64
    $region33: #{tpu_custom_call.1} parent=1 // pred_fallthru
      _
    // Predicated region
    $region34: #{tpu_custom_call.1} parent=1 // pred_check
      _
    $region35: #{tpu_custom_call.1} parent=1 // pred_check_branch
      %84 = sbr.rel (0) target = $region37
    $region36: #{tpu_custom_call.1} parent=1 // pred_region
      %86 = dma.done [#allocation6], 128
    $region37: #{tpu_custom_call.1} parent=1 // pred_fallthru
      _
    // Predicated region
    $region38: #{tpu_custom_call.1} parent=1 // pred_check
      _
    $region39: #{tpu_custom_call.1} parent=1 // pred_check_branch
      %88 = sbr.rel (0) target = $region41
    $region40: #{tpu_custom_call.1} parent=1 // pred_region
      %90 = dma.done [#allocation6], 2048
    $region41: #{tpu_custom_call.1} parent=1 // pred_fallthru
      _
    // Predicated region
    $region42: #{tpu_custom_call.1} parent=1 // pred_check
      _
    $region43: #{tpu_custom_call.1} parent=1 // pred_check_branch
      %92 = sbr.rel (0) target = $region45
    $region44: #{tpu_custom_call.1} parent=1 // pred_region
      %94 = dma.done [#allocation9], 16384
    $region45: #{tpu_custom_call.1} parent=1 // pred_fallthru
      _
    // Predicated region
    $region46: #{tpu_custom_call.1} parent=1 // pred_check
      _
    $region47: #{tpu_custom_call.1} parent=1 // pred_check_branch
      %96 = sbr.rel (0) target = $region49
    $region48: #{tpu_custom_call.1} parent=1 // pred_region
      %98 = dma.done [#allocation9], 256
    $region49: #{tpu_custom_call.1} parent=1 // pred_fallthru
      _
    %v100 = vld [vmem:[#allocation2] sm:$0xf]
    %v101 = vld [vmem:[%s2] sm:$0xf]
    %v102 = vld [vmem:[%s2 + $0x4] sm:$0x1]
    %v103 = vld [vmem:[#allocation5] sm:$0x1]
    %v104 = vperm.slane %v103, 0
    %v107 = vunpack.c.l.b16 %v101
    %v108 = vunpack.c.l.b16 %v102
    %v109 = vpack.c.b16 %v108, %v107
    %vm110 = vcmask 80896
    %v112 = vsel %vm110, %v100, 0
    %vm114 = vcmask 1044480
    %v116 = vsel %vm114, %v109, 0
    %118 = vmatpush.bf16.msra.mxu0 0
    %119 = vmatpush.bf16.msra.mxu0 0
    %120 = vmatpush.bf16.msra.mxu0 0
    %121 = vmatpush.bf16.msra.mxu0 0
    %122 = vmatpush.bf16.msra.mxu0 0
    %123 = vmatpush.bf16.msra.mxu0 0
    %124 = vmatpush.bf16.msra.mxu0 0
    %125 = vmatpush.bf16.msra.mxu0 %v116
    %126 = vmatmul.bf16.gmra.mxu0 %v112
    %v127 = vpop.f32.mrf.mxu0
    %v128 = vadd.f32 %v104, %v127
    %v129 = vpop.f32.mrf.mxu0
    %130 = vdwg.mxu0
    %v131 = vld [vmem:[#allocation7] sm:$0xff]
    %v132 = vld [vmem:[#allocation7 + $0x8] sm:$0xff]
    %v133 = vld [vmem:[#allocation7 + $0x10] sm:$0xff]
    %v134 = vld [vmem:[#allocation7 + $0x18] sm:$0xff]
    %v135 = vld [vmem:[#allocation7 + $0x20] sm:$0xff]
    %v136 = vld [vmem:[#allocation7 + $0x28] sm:$0xff]
    %v137 = vld [vmem:[#allocation7 + $0x30] sm:$0xff]
    %v138 = vld [vmem:[#allocation7 + $0x38] sm:$0xff]
    %v139 = vld [vmem:[#allocation7 + $0x40] sm:$0xff]
    %v140 = vld [vmem:[#allocation7 + $0x48] sm:$0xff]
    %v141 = vld [vmem:[#allocation7 + $0x50] sm:$0xff]
    %v142 = vld [vmem:[#allocation7 + $0x58] sm:$0xff]
    %v143 = vld [vmem:[#allocation7 + $0x60] sm:$0xff]
    %v144 = vld [vmem:[#allocation7 + $0x68] sm:$0xff]
    %v145 = vld [vmem:[#allocation7 + $0x70] sm:$0xff]
    %v146 = vld [vmem:[#allocation7 + $0x78] sm:$0xff]
    %v147 = vld [vmem:[%s1] sm:$0xff]
    %v148 = vld [vmem:[#allocation5 + $0x6] sm:$0x1]
    %150 = vset.pattern.permute.xlu0 0
    %151 = vperm.xlu0 %150, %v147
    %v152 = vpop.permute.xlu0 %151
    %v154 = vperm.slane %v148, 0
    %v155 = vmul.f32 %v152, %v154
    %156 = vmatpush.msra.mxu0 %v146
    %157 = vmatpush.msra.mxu0 %v145
    %158 = vmatpush.msra.mxu0 %v144
    %159 = vmatpush.msra.mxu0 %v143
    %160 = vmatpush.msra.mxu0 %v142
    %161 = vmatpush.msra.mxu0 %v141
    %162 = vmatpush.msra.mxu0 %v140
    %163 = vmatpush.msra.mxu0 %v139
    %164 = vmatpush.msra.mxu0 %v138
    %165 = vmatpush.msra.mxu0 %v137
    %166 = vmatpush.msra.mxu0 %v136
    %167 = vmatpush.msra.mxu0 %v135
    %168 = vmatpush.msra.mxu0 %v134
    %169 = vmatpush.msra.mxu0 %v133
    %170 = vmatpush.msra.mxu0 %v132
    %171 = vmatpush.msra.mxu0 %v131
    %172 = vmatmul.f32.gmra.mxu0 %v128
    %v173 = vpop.f32.mrf.mxu0
    %v174 = vadd.f32 %v155, %v173
    %175 = vdwg.mxu0
    %v176 = vld [vmem:[#allocation5 + $0x5] sm:$0x1]
    %v177 = vperm.slane %v176, 0
    %v178 = vadd.f32 %v174, %v177
    %vm179 = vcmp.gt.f32.partialorder %v178, 0.0
    %v180 = vmul.f32 %v178, 0.01
    %v181 = vsel %vm179, %v178, %v180
    %v182 = vrot.slane %v181, 4
    %v183 = vadd.f32 %v181, %v182
    %v184 = vrot.slane %v183, 2
    %v185 = vadd.f32 %v183, %v184
    %v186 = vrot.slane %v185, 1
    %v187 = vadd.f32 %v185, %v186
    %v188 = vrcp.pop 8.0
    %v189 = vmul.f32 8.0, %v188
    %v190 = vsub.f32 1.0, %v189
    %v191 = vmul.f32 %v188, %v190
    %v192 = vadd.f32 %v188, %v191
    %vm193 = vweird.f32 %v188
    %v194 = vsel %vm193, %v188, %v192
    %v195 = vmul.f32 %v187, %v194
    %v196 = vpack.c.bf16 %v195, %v195
    %v197 = vld [vmem:[#allocation8] sm:$0xff]
    %v198 = vld [vmem:[#allocation8 + $0x8] sm:$0xff]
    %v199 = vld [vmem:[#allocation8 + $0x10] sm:$0xff]
    %v200 = vld [vmem:[#allocation8 + $0x18] sm:$0xff]
    %v201 = vld [vmem:[#allocation8 + $0x20] sm:$0xff]
    %v202 = vld [vmem:[#allocation8 + $0x28] sm:$0xff]
    %v203 = vld [vmem:[#allocation8 + $0x30] sm:$0xff]
    %v204 = vld [vmem:[#allocation8 + $0x38] sm:$0xff]
    %v205 = vld [vmem:[#allocation8 + $0x40] sm:$0xff]
    %v206 = vld [vmem:[#allocation8 + $0x48] sm:$0xff]
    %v207 = vld [vmem:[#allocation8 + $0x50] sm:$0xff]
    %v208 = vld [vmem:[#allocation8 + $0x58] sm:$0xff]
    %v209 = vld [vmem:[#allocation8 + $0x60] sm:$0xff]
    %v210 = vld [vmem:[#allocation8 + $0x68] sm:$0xff]
    %v211 = vld [vmem:[#allocation8 + $0x70] sm:$0xff]
    %v212 = vld [vmem:[#allocation8 + $0x78] sm:$0xff]
    %v213 = vld [vmem:[#allocation8 + $0x80] sm:$0xff]
    %v214 = vld [vmem:[#allocation8 + $0x88] sm:$0xff]
    %v215 = vld [vmem:[#allocation8 + $0x90] sm:$0xff]
    %v216 = vld [vmem:[#allocation8 + $0x98] sm:$0xff]
    %v217 = vld [vmem:[#allocation8 + $0xa0] sm:$0xff]
    %v218 = vld [vmem:[#allocation8 + $0xa8] sm:$0xff]
    %v219 = vld [vmem:[#allocation8 + $0xb0] sm:$0xff]
    %v220 = vld [vmem:[#allocation8 + $0xb8] sm:$0xff]
    %v221 = vld [vmem:[#allocation8 + $0xc0] sm:$0xff]
    %v222 = vld [vmem:[#allocation8 + $0xc8] sm:$0xff]
    %v223 = vld [vmem:[#allocation8 + $0xd0] sm:$0xff]
    %v224 = vld [vmem:[#allocation8 + $0xd8] sm:$0xff]
    %v225 = vld [vmem:[#allocation8 + $0xe0] sm:$0xff]
    %v226 = vld [vmem:[#allocation8 + $0xe8] sm:$0xff]
    %v227 = vld [vmem:[#allocation8 + $0xf0] sm:$0xff]
    %v228 = vld [vmem:[#allocation8 + $0xf8] sm:$0xff]
    %v229 = vld [vmem:[#allocation8 + $0x100] sm:$0xff]
    %v230 = vld [vmem:[#allocation8 + $0x108] sm:$0xff]
    %v231 = vld [vmem:[#allocation8 + $0x110] sm:$0xff]
    %v232 = vld [vmem:[#allocation8 + $0x118] sm:$0xff]
    %v233 = vld [vmem:[#allocation8 + $0x120] sm:$0xff]
    %v234 = vld [vmem:[#allocation8 + $0x128] sm:$0xff]
    %v235 = vld [vmem:[#allocation8 + $0x130] sm:$0xff]
    %v236 = vld [vmem:[#allocation8 + $0x138] sm:$0xff]
    %v237 = vld [vmem:[#allocation8 + $0x140] sm:$0xff]
    %v238 = vld [vmem:[#allocation8 + $0x148] sm:$0xff]
    %v239 = vld [vmem:[#allocation8 + $0x150] sm:$0xff]
    %v240 = vld [vmem:[#allocation8 + $0x158] sm:$0xff]
    %v241 = vld [vmem:[#allocation8 + $0x160] sm:$0xff]
    %v242 = vld [vmem:[#allocation8 + $0x168] sm:$0xff]
    %v243 = vld [vmem:[#allocation8 + $0x170] sm:$0xff]
    %v244 = vld [vmem:[#allocation8 + $0x178] sm:$0xff]
    %v245 = vld [vmem:[#allocation8 + $0x180] sm:$0xff]
    %v246 = vld [vmem:[#allocation8 + $0x188] sm:$0xff]
    %v247 = vld [vmem:[#allocation8 + $0x190] sm:$0xff]
    %v248 = vld [vmem:[#allocation8 + $0x198] sm:$0xff]
    %v249 = vld [vmem:[#allocation8 + $0x1a0] sm:$0xff]
    %v250 = vld [vmem:[#allocation8 + $0x1a8] sm:$0xff]
    %v251 = vld [vmem:[#allocation8 + $0x1b0] sm:$0xff]
    %v252 = vld [vmem:[#allocation8 + $0x1b8] sm:$0xff]
    %v253 = vld [vmem:[#allocation8 + $0x1c0] sm:$0xff]
    %v254 = vld [vmem:[#allocation8 + $0x1c8] sm:$0xff]
    %v255 = vld [vmem:[#allocation8 + $0x1d0] sm:$0xff]
    %v256 = vld [vmem:[#allocation8 + $0x1d8] sm:$0xff]
    %v257 = vld [vmem:[#allocation8 + $0x1e0] sm:$0xff]
    %v258 = vld [vmem:[#allocation8 + $0x1e8] sm:$0xff]
    %v259 = vld [vmem:[#allocation8 + $0x1f0] sm:$0xff]
    %v260 = vld [vmem:[#allocation8 + $0x1f8] sm:$0xff]
    %v261 = vld [vmem:[#allocation8 + $0x200] sm:$0xff]
    %v262 = vld [vmem:[#allocation8 + $0x208] sm:$0xff]
    %v263 = vld [vmem:[#allocation8 + $0x210] sm:$0xff]
    %v264 = vld [vmem:[#allocation8 + $0x218] sm:$0xff]
    %v265 = vld [vmem:[#allocation8 + $0x220] sm:$0xff]
    %v266 = vld [vmem:[#allocation8 + $0x228] sm:$0xff]
    %v267 = vld [vmem:[#allocation8 + $0x230] sm:$0xff]
    %v268 = vld [vmem:[#allocation8 + $0x238] sm:$0xff]
    %v269 = vld [vmem:[#allocation8 + $0x240] sm:$0xff]
    %v270 = vld [vmem:[#allocation8 + $0x248] sm:$0xff]
    %v271 = vld [vmem:[#allocation8 + $0x250] sm:$0xff]
    %v272 = vld [vmem:[#allocation8 + $0x258] sm:$0xff]
    %v273 = vld [vmem:[#allocation8 + $0x260] sm:$0xff]
    %v274 = vld [vmem:[#allocation8 + $0x268] sm:$0xff]
    %v275 = vld [vmem:[#allocation8 + $0x270] sm:$0xff]
    %v276 = vld [vmem:[#allocation8 + $0x278] sm:$0xff]
    %v277 = vld [vmem:[#allocation8 + $0x280] sm:$0xff]
    %v278 = vld [vmem:[#allocation8 + $0x288] sm:$0xff]
    %v279 = vld [vmem:[#allocation8 + $0x290] sm:$0xff]
    %v280 = vld [vmem:[#allocation8 + $0x298] sm:$0xff]
    %v281 = vld [vmem:[#allocation8 + $0x2a0] sm:$0xff]
    %v282 = vld [vmem:[#allocation8 + $0x2a8] sm:$0xff]
    %v283 = vld [vmem:[#allocation8 + $0x2b0] sm:$0xff]
    %v284 = vld [vmem:[#allocation8 + $0x2b8] sm:$0xff]
    %v285 = vld [vmem:[#allocation8 + $0x2c0] sm:$0xff]
    %v286 = vld [vmem:[#allocation8 + $0x2c8] sm:$0xff]
    %v287 = vld [vmem:[#allocation8 + $0x2d0] sm:$0xff]
    %v288 = vld [vmem:[#allocation8 + $0x2d8] sm:$0xff]
    %v289 = vld [vmem:[#allocation8 + $0x2e0] sm:$0xff]
    %v290 = vld [vmem:[#allocation8 + $0x2e8] sm:$0xff]
    %v291 = vld [vmem:[#allocation8 + $0x2f0] sm:$0xff]
    %v292 = vld [vmem:[#allocation8 + $0x2f8] sm:$0xff]
    %v293 = vld [vmem:[#allocation8 + $0x300] sm:$0xff]
    %v294 = vld [vmem:[#allocation8 + $0x308] sm:$0xff]
    %v295 = vld [vmem:[#allocation8 + $0x310] sm:$0xff]
    %v296 = vld [vmem:[#allocation8 + $0x318] sm:$0xff]
    %v297 = vld [vmem:[#allocation8 + $0x320] sm:$0xff]
    %v298 = vld [vmem:[#allocation8 + $0x328] sm:$0xff]
    %v299 = vld [vmem:[#allocation8 + $0x330] sm:$0xff]
    %v300 = vld [vmem:[#allocation8 + $0x338] sm:$0xff]
    %v301 = vld [vmem:[#allocation8 + $0x340] sm:$0xff]
    %v302 = vld [vmem:[#allocation8 + $0x348] sm:$0xff]
    %v303 = vld [vmem:[#allocation8 + $0x350] sm:$0xff]
    %v304 = vld [vmem:[#allocation8 + $0x358] sm:$0xff]
    %v305 = vld [vmem:[#allocation8 + $0x360] sm:$0xff]
    %v306 = vld [vmem:[#allocation8 + $0x368] sm:$0xff]
    %v307 = vld [vmem:[#allocation8 + $0x370] sm:$0xff]
    %v308 = vld [vmem:[#allocation8 + $0x378] sm:$0xff]
    %v309 = vld [vmem:[#allocation8 + $0x380] sm:$0xff]
    %v310 = vld [vmem:[#allocation8 + $0x388] sm:$0xff]
    %v311 = vld [vmem:[#allocation8 + $0x390] sm:$0xff]
    %v312 = vld [vmem:[#allocation8 + $0x398] sm:$0xff]
    %v313 = vld [vmem:[#allocation8 + $0x3a0] sm:$0xff]
    %v314 = vld [vmem:[#allocation8 + $0x3a8] sm:$0xff]
    %v315 = vld [vmem:[#allocation8 + $0x3b0] sm:$0xff]
    %v316 = vld [vmem:[#allocation8 + $0x3b8] sm:$0xff]
    %v317 = vld [vmem:[#allocation8 + $0x3c0] sm:$0xff]
    %v318 = vld [vmem:[#allocation8 + $0x3c8] sm:$0xff]
    %v319 = vld [vmem:[#allocation8 + $0x3d0] sm:$0xff]
    %v320 = vld [vmem:[#allocation8 + $0x3d8] sm:$0xff]
    %v321 = vld [vmem:[#allocation8 + $0x3e0] sm:$0xff]
    %v322 = vld [vmem:[#allocation8 + $0x3e8] sm:$0xff]
    %v323 = vld [vmem:[#allocation8 + $0x3f0] sm:$0xff]
    %v324 = vld [vmem:[#allocation8 + $0x3f8] sm:$0xff]
    %v325 = vld [vmem:[#allocation10] sm:$0xff]
    %v326 = vld [vmem:[#allocation10 + $0x8] sm:$0xff]
    %v455 = vunpack.c.l.b16 %v197
    %v456 = vunpack.c.h.b16 %v197
    %v457 = vunpack.c.l.b16 %v198
    %v458 = vunpack.c.h.b16 %v198
    %v459 = vunpack.c.l.b16 %v199
    %v460 = vunpack.c.h.b16 %v199
    %v461 = vunpack.c.l.b16 %v200
    %v462 = vunpack.c.h.b16 %v200
    %v463 = vunpack.c.l.b16 %v201
    %v464 = vunpack.c.h.b16 %v201
    %v465 = vunpack.c.l.b16 %v202
    %v466 = vunpack.c.h.b16 %v202
    %v467 = vunpack.c.l.b16 %v203
    %v468 = vunpack.c.h.b16 %v203
    %v469 = vunpack.c.l.b16 %v204
    %v470 = vunpack.c.h.b16 %v204
    %v471 = vunpack.c.l.b16 %v205
    %v472 = vunpack.c.h.b16 %v205
    %v473 = vunpack.c.l.b16 %v206
    %v474 = vunpack.c.h.b16 %v206
    %v475 = vunpack.c.l.b16 %v207
    %v476 = vunpack.c.h.b16 %v207
    %v477 = vunpack.c.l.b16 %v208
    %v478 = vunpack.c.h.b16 %v208
    %v479 = vunpack.c.l.b16 %v209
    %v480 = vunpack.c.h.b16 %v209
    %v481 = vunpack.c.l.b16 %v210
    %v482 = vunpack.c.h.b16 %v210
    %v483 = vunpack.c.l.b16 %v211
    %v484 = vunpack.c.h.b16 %v211
    %v485 = vunpack.c.l.b16 %v212
    %v486 = vunpack.c.h.b16 %v212
    %v487 = vunpack.c.l.b16 %v213
    %v488 = vunpack.c.h.b16 %v213
    %v489 = vunpack.c.l.b16 %v214
    %v490 = vunpack.c.h.b16 %v214
    %v491 = vunpack.c.l.b16 %v215
    %v492 = vunpack.c.h.b16 %v215
    %v493 = vunpack.c.l.b16 %v216
    %v494 = vunpack.c.h.b16 %v216
    %v495 = vunpack.c.l.b16 %v217
    %v496 = vunpack.c.h.b16 %v217
    %v497 = vunpack.c.l.b16 %v218
    %v498 = vunpack.c.h.b16 %v218
    %v499 = vunpack.c.l.b16 %v219
    %v500 = vunpack.c.h.b16 %v219
    %v501 = vunpack.c.l.b16 %v220
    %v502 = vunpack.c.h.b16 %v220
    %v503 = vunpack.c.l.b16 %v221
    %v504 = vunpack.c.h.b16 %v221
    %v505 = vunpack.c.l.b16 %v222
    %v506 = vunpack.c.h.b16 %v222
    %v507 = vunpack.c.l.b16 %v223
    %v508 = vunpack.c.h.b16 %v223
    %v509 = vunpack.c.l.b16 %v224
    %v510 = vunpack.c.h.b16 %v224
    %v511 = vunpack.c.l.b16 %v225
    %v512 = vunpack.c.h.b16 %v225
    %v513 = vunpack.c.l.b16 %v226
    %v514 = vunpack.c.h.b16 %v226
    %v515 = vunpack.c.l.b16 %v227
    %v516 = vunpack.c.h.b16 %v227
    %v517 = vunpack.c.l.b16 %v228
    %v518 = vunpack.c.h.b16 %v228
    %v519 = vunpack.c.l.b16 %v229
    %v520 = vunpack.c.h.b16 %v229
    %v521 = vunpack.c.l.b16 %v230
    %v522 = vunpack.c.h.b16 %v230
    %v523 = vunpack.c.l.b16 %v231
    %v524 = vunpack.c.h.b16 %v231
    %v525 = vunpack.c.l.b16 %v232
    %v526 = vunpack.c.h.b16 %v232
    %v527 = vunpack.c.l.b16 %v233
    %v528 = vunpack.c.h.b16 %v233
    %v529 = vunpack.c.l.b16 %v234
    %v530 = vunpack.c.h.b16 %v234
    %v531 = vunpack.c.l.b16 %v235
    %v532 = vunpack.c.h.b16 %v235
    %v533 = vunpack.c.l.b16 %v236
    %v534 = vunpack.c.h.b16 %v236
    %v535 = vunpack.c.l.b16 %v237
    %v536 = vunpack.c.h.b16 %v237
    %v537 = vunpack.c.l.b16 %v238
    %v538 = vunpack.c.h.b16 %v238
    %v539 = vunpack.c.l.b16 %v239
    %v540 = vunpack.c.h.b16 %v239
    %v541 = vunpack.c.l.b16 %v240
    %v542 = vunpack.c.h.b16 %v240
    %v543 = vunpack.c.l.b16 %v241
    %v544 = vunpack.c.h.b16 %v241
    %v545 = vunpack.c.l.b16 %v242
    %v546 = vunpack.c.h.b16 %v242
    %v547 = vunpack.c.l.b16 %v243
    %v548 = vunpack.c.h.b16 %v243
    %v549 = vunpack.c.l.b16 %v244
    %v550 = vunpack.c.h.b16 %v244
    %v551 = vunpack.c.l.b16 %v245
    %v552 = vunpack.c.h.b16 %v245
    %v553 = vunpack.c.l.b16 %v246
    %v554 = vunpack.c.h.b16 %v246
    %v555 = vunpack.c.l.b16 %v247
    %v556 = vunpack.c.h.b16 %v247
    %v557 = vunpack.c.l.b16 %v248
    %v558 = vunpack.c.h.b16 %v248
    %v559 = vunpack.c.l.b16 %v249
    %v560 = vunpack.c.h.b16 %v249
    %v561 = vunpack.c.l.b16 %v250
    %v562 = vunpack.c.h.b16 %v250
    %v563 = vunpack.c.l.b16 %v251
    %v564 = vunpack.c.h.b16 %v251
    %v565 = vunpack.c.l.b16 %v252
    %v566 = vunpack.c.h.b16 %v252
    %v567 = vunpack.c.l.b16 %v253
    %v568 = vunpack.c.h.b16 %v253
    %v569 = vunpack.c.l.b16 %v254
    %v570 = vunpack.c.h.b16 %v254
    %v571 = vunpack.c.l.b16 %v255
    %v572 = vunpack.c.h.b16 %v255
    %v573 = vunpack.c.l.b16 %v256
    %v574 = vunpack.c.h.b16 %v256
    %v575 = vunpack.c.l.b16 %v257
    %v576 = vunpack.c.h.b16 %v257
    %v577 = vunpack.c.l.b16 %v258
    %v578 = vunpack.c.h.b16 %v258
    %v579 = vunpack.c.l.b16 %v259
    %v580 = vunpack.c.h.b16 %v259
    %v581 = vunpack.c.l.b16 %v260
    %v582 = vunpack.c.h.b16 %v260
    %v583 = vunpack.c.l.b16 %v261
    %v584 = vunpack.c.h.b16 %v261
    %v585 = vunpack.c.l.b16 %v262
    %v586 = vunpack.c.h.b16 %v262
    %v587 = vunpack.c.l.b16 %v263
    %v588 = vunpack.c.h.b16 %v263
    %v589 = vunpack.c.l.b16 %v264
    %v590 = vunpack.c.h.b16 %v264
    %v591 = vunpack.c.l.b16 %v265
    %v592 = vunpack.c.h.b16 %v265
    %v593 = vunpack.c.l.b16 %v266
    %v594 = vunpack.c.h.b16 %v266
    %v595 = vunpack.c.l.b16 %v267
    %v596 = vunpack.c.h.b16 %v267
    %v597 = vunpack.c.l.b16 %v268
    %v598 = vunpack.c.h.b16 %v268
    %v599 = vunpack.c.l.b16 %v269
    %v600 = vunpack.c.h.b16 %v269
    %v601 = vunpack.c.l.b16 %v270
    %v602 = vunpack.c.h.b16 %v270
    %v603 = vunpack.c.l.b16 %v271
    %v604 = vunpack.c.h.b16 %v271
    %v605 = vunpack.c.l.b16 %v272
    %v606 = vunpack.c.h.b16 %v272
    %v607 = vunpack.c.l.b16 %v273
    %v608 = vunpack.c.h.b16 %v273
    %v609 = vunpack.c.l.b16 %v274
    %v610 = vunpack.c.h.b16 %v274
    %v611 = vunpack.c.l.b16 %v275
    %v612 = vunpack.c.h.b16 %v275
    %v613 = vunpack.c.l.b16 %v276
    %v614 = vunpack.c.h.b16 %v276
    %v615 = vunpack.c.l.b16 %v277
    %v616 = vunpack.c.h.b16 %v277
    %v617 = vunpack.c.l.b16 %v278
    %v618 = vunpack.c.h.b16 %v278
    %v619 = vunpack.c.l.b16 %v279
    %v620 = vunpack.c.h.b16 %v279
    %v621 = vunpack.c.l.b16 %v280
    %v622 = vunpack.c.h.b16 %v280
    %v623 = vunpack.c.l.b16 %v281
    %v624 = vunpack.c.h.b16 %v281
    %v625 = vunpack.c.l.b16 %v282
    %v626 = vunpack.c.h.b16 %v282
    %v627 = vunpack.c.l.b16 %v283
    %v628 = vunpack.c.h.b16 %v283
    %v629 = vunpack.c.l.b16 %v284
    %v630 = vunpack.c.h.b16 %v284
    %v631 = vunpack.c.l.b16 %v285
    %v632 = vunpack.c.h.b16 %v285
    %v633 = vunpack.c.l.b16 %v286
    %v634 = vunpack.c.h.b16 %v286
    %v635 = vunpack.c.l.b16 %v287
    %v636 = vunpack.c.h.b16 %v287
    %v637 = vunpack.c.l.b16 %v288
    %v638 = vunpack.c.h.b16 %v288
    %v639 = vunpack.c.l.b16 %v289
    %v640 = vunpack.c.h.b16 %v289
    %v641 = vunpack.c.l.b16 %v290
    %v642 = vunpack.c.h.b16 %v290
    %v643 = vunpack.c.l.b16 %v291
    %v644 = vunpack.c.h.b16 %v291
    %v645 = vunpack.c.l.b16 %v292
    %v646 = vunpack.c.h.b16 %v292
    %v647 = vunpack.c.l.b16 %v293
    %v648 = vunpack.c.h.b16 %v293
    %v649 = vunpack.c.l.b16 %v294
    %v650 = vunpack.c.h.b16 %v294
    %v651 = vunpack.c.l.b16 %v295
    %v652 = vunpack.c.h.b16 %v295
    %v653 = vunpack.c.l.b16 %v296
    %v654 = vunpack.c.h.b16 %v296
    %v655 = vunpack.c.l.b16 %v297
    %v656 = vunpack.c.h.b16 %v297
    %v657 = vunpack.c.l.b16 %v298
    %v658 = vunpack.c.h.b16 %v298
    %v659 = vunpack.c.l.b16 %v299
    %v660 = vunpack.c.h.b16 %v299
    %v661 = vunpack.c.l.b16 %v300
    %v662 = vunpack.c.h.b16 %v300
    %v663 = vunpack.c.l.b16 %v301
    %v664 = vunpack.c.h.b16 %v301
    %v665 = vunpack.c.l.b16 %v302
    %v666 = vunpack.c.h.b16 %v302
    %v667 = vunpack.c.l.b16 %v303
    %v668 = vunpack.c.h.b16 %v303
    %v669 = vunpack.c.l.b16 %v304
    %v670 = vunpack.c.h.b16 %v304
    %v671 = vunpack.c.l.b16 %v305
    %v672 = vunpack.c.h.b16 %v305
    %v673 = vunpack.c.l.b16 %v306
    %v674 = vunpack.c.h.b16 %v306
    %v675 = vunpack.c.l.b16 %v307
    %v676 = vunpack.c.h.b16 %v307
    %v677 = vunpack.c.l.b16 %v308
    %v678 = vunpack.c.h.b16 %v308
    %v679 = vunpack.c.l.b16 %v309
    %v680 = vunpack.c.h.b16 %v309
    %v681 = vunpack.c.l.b16 %v310
    %v682 = vunpack.c.h.b16 %v310
    %v683 = vunpack.c.l.b16 %v311
    %v684 = vunpack.c.h.b16 %v311
    %v685 = vunpack.c.l.b16 %v312
    %v686 = vunpack.c.h.b16 %v312
    %v687 = vunpack.c.l.b16 %v313
    %v688 = vunpack.c.h.b16 %v313
    %v689 = vunpack.c.l.b16 %v314
    %v690 = vunpack.c.h.b16 %v314
    %v691 = vunpack.c.l.b16 %v315
    %v692 = vunpack.c.h.b16 %v315
    %v693 = vunpack.c.l.b16 %v316
    %v694 = vunpack.c.h.b16 %v316
    %v695 = vunpack.c.l.b16 %v317
    %v696 = vunpack.c.h.b16 %v317
    %v697 = vunpack.c.l.b16 %v318
    %v698 = vunpack.c.h.b16 %v318
    %v699 = vunpack.c.l.b16 %v319
    %v700 = vunpack.c.h.b16 %v319
    %v701 = vunpack.c.l.b16 %v320
    %v702 = vunpack.c.h.b16 %v320
    %v703 = vunpack.c.l.b16 %v321
    %v704 = vunpack.c.h.b16 %v321
    %v705 = vunpack.c.l.b16 %v322
    %v706 = vunpack.c.h.b16 %v322
    %v707 = vunpack.c.l.b16 %v323
    %v708 = vunpack.c.h.b16 %v323
    %v709 = vunpack.c.l.b16 %v324
    %v710 = vunpack.c.h.b16 %v324
    %v711 = vpack.c.b16 %v471, %v455
    %v712 = vpack.c.b16 %v472, %v456
    %v713 = vpack.c.b16 %v473, %v457
    %v714 = vpack.c.b16 %v474, %v458
    %v715 = vpack.c.b16 %v475, %v459
    %v716 = vpack.c.b16 %v476, %v460
    %v717 = vpack.c.b16 %v477, %v461
    %v718 = vpack.c.b16 %v478, %v462
    %v719 = vpack.c.b16 %v479, %v463
    %v720 = vpack.c.b16 %v480, %v464
    %v721 = vpack.c.b16 %v481, %v465
    %v722 = vpack.c.b16 %v482, %v466
    %v723 = vpack.c.b16 %v483, %v467
    %v724 = vpack.c.b16 %v484, %v468
    %v725 = vpack.c.b16 %v485, %v469
    %v726 = vpack.c.b16 %v486, %v470
    %v727 = vpack.c.b16 %v503, %v487
    %v728 = vpack.c.b16 %v504, %v488
    %v729 = vpack.c.b16 %v505, %v489
    %v730 = vpack.c.b16 %v506, %v490
    %v731 = vpack.c.b16 %v507, %v491
    %v732 = vpack.c.b16 %v508, %v492
    %v733 = vpack.c.b16 %v509, %v493
    %v734 = vpack.c.b16 %v510, %v494
    %v735 = vpack.c.b16 %v511, %v495
    %v736 = vpack.c.b16 %v512, %v496
    %v737 = vpack.c.b16 %v513, %v497
    %v738 = vpack.c.b16 %v514, %v498
    %v739 = vpack.c.b16 %v515, %v499
    %v740 = vpack.c.b16 %v516, %v500
    %v741 = vpack.c.b16 %v517, %v501
    %v742 = vpack.c.b16 %v518, %v502
    %v743 = vpack.c.b16 %v535, %v519
    %v744 = vpack.c.b16 %v536, %v520
    %v745 = vpack.c.b16 %v537, %v521
    %v746 = vpack.c.b16 %v538, %v522
    %v747 = vpack.c.b16 %v539, %v523
    %v748 = vpack.c.b16 %v540, %v524
    %v749 = vpack.c.b16 %v541, %v525
    %v750 = vpack.c.b16 %v542, %v526
    %v751 = vpack.c.b16 %v543, %v527
    %v752 = vpack.c.b16 %v544, %v528
    %v753 = vpack.c.b16 %v545, %v529
    %v754 = vpack.c.b16 %v546, %v530
    %v755 = vpack.c.b16 %v547, %v531
    %v756 = vpack.c.b16 %v548, %v532
    %v757 = vpack.c.b16 %v549, %v533
    %v758 = vpack.c.b16 %v550, %v534
    %v759 = vpack.c.b16 %v567, %v551
    %v760 = vpack.c.b16 %v568, %v552
    %v761 = vpack.c.b16 %v569, %v553
    %v762 = vpack.c.b16 %v570, %v554
    %v763 = vpack.c.b16 %v571, %v555
    %v764 = vpack.c.b16 %v572, %v556
    %v765 = vpack.c.b16 %v573, %v557
    %v766 = vpack.c.b16 %v574, %v558
    %v767 = vpack.c.b16 %v575, %v559
    %v768 = vpack.c.b16 %v576, %v560
    %v769 = vpack.c.b16 %v577, %v561
    %v770 = vpack.c.b16 %v578, %v562
    %v771 = vpack.c.b16 %v579, %v563
    %v772 = vpack.c.b16 %v580, %v564
    %v773 = vpack.c.b16 %v581, %v565
    %v774 = vpack.c.b16 %v582, %v566
    %v775 = vpack.c.b16 %v599, %v583
    %v776 = vpack.c.b16 %v600, %v584
    %v777 = vpack.c.b16 %v601, %v585
    %v778 = vpack.c.b16 %v602, %v586
    %v779 = vpack.c.b16 %v603, %v587
    %v780 = vpack.c.b16 %v604, %v588
    %v781 = vpack.c.b16 %v605, %v589
    %v782 = vpack.c.b16 %v606, %v590
    %v783 = vpack.c.b16 %v607, %v591
    %v784 = vpack.c.b16 %v608, %v592
    %v785 = vpack.c.b16 %v609, %v593
    %v786 = vpack.c.b16 %v610, %v594
    %v787 = vpack.c.b16 %v611, %v595
    %v788 = vpack.c.b16 %v612, %v596
    %v789 = vpack.c.b16 %v613, %v597
    %v790 = vpack.c.b16 %v614, %v598
    %v791 = vpack.c.b16 %v631, %v615
    %v792 = vpack.c.b16 %v632, %v616
    %v793 = vpack.c.b16 %v633, %v617
    %v794 = vpack.c.b16 %v634, %v618
    %v795 = vpack.c.b16 %v635, %v619
    %v796 = vpack.c.b16 %v636, %v620
    %v797 = vpack.c.b16 %v637, %v621
    %v798 = vpack.c.b16 %v638, %v622
    %v799 = vpack.c.b16 %v639, %v623
    %v800 = vpack.c.b16 %v640, %v624
    %v801 = vpack.c.b16 %v641, %v625
    %v802 = vpack.c.b16 %v642, %v626
    %v803 = vpack.c.b16 %v643, %v627
    %v804 = vpack.c.b16 %v644, %v628
    %v805 = vpack.c.b16 %v645, %v629
    %v806 = vpack.c.b16 %v646, %v630
    %v807 = vpack.c.b16 %v663, %v647
    %v808 = vpack.c.b16 %v664, %v648
    %v809 = vpack.c.b16 %v665, %v649
    %v810 = vpack.c.b16 %v666, %v650
    %v811 = vpack.c.b16 %v667, %v651
    %v812 = vpack.c.b16 %v668, %v652
    %v813 = vpack.c.b16 %v669, %v653
    %v814 = vpack.c.b16 %v670, %v654
    %v815 = vpack.c.b16 %v671, %v655
    %v816 = vpack.c.b16 %v672, %v656
    %v817 = vpack.c.b16 %v673, %v657
    %v818 = vpack.c.b16 %v674, %v658
    %v819 = vpack.c.b16 %v675, %v659
    %v820 = vpack.c.b16 %v676, %v660
    %v821 = vpack.c.b16 %v677, %v661
    %v822 = vpack.c.b16 %v678, %v662
    %v823 = vpack.c.b16 %v695, %v679
    %v824 = vpack.c.b16 %v696, %v680
    %v825 = vpack.c.b16 %v697, %v681
    %v826 = vpack.c.b16 %v698, %v682
    %v827 = vpack.c.b16 %v699, %v683
    %v828 = vpack.c.b16 %v700, %v684
    %v829 = vpack.c.b16 %v701, %v685
    %v830 = vpack.c.b16 %v702, %v686
    %v831 = vpack.c.b16 %v703, %v687
    %v832 = vpack.c.b16 %v704, %v688
    %v833 = vpack.c.b16 %v705, %v689
    %v834 = vpack.c.b16 %v706, %v690
    %v835 = vpack.c.b16 %v707, %v691
    %v836 = vpack.c.b16 %v708, %v692
    %v837 = vpack.c.b16 %v709, %v693
    %v838 = vpack.c.b16 %v710, %v694
    %v969 = vperm.slane %v325, 0
    %v970 = vperm.slane %v325, 1
    %v971 = vperm.slane %v325, 2
    %v972 = vperm.slane %v325, 3
    %v973 = vperm.slane %v325, 4
    %v974 = vperm.slane %v325, 5
    %v975 = vperm.slane %v325, 6
    %v976 = vperm.slane %v325, 7
    %v977 = vperm.slane %v326, 0
    %v978 = vperm.slane %v326, 1
    %v979 = vperm.slane %v326, 2
    %v980 = vperm.slane %v326, 3
    %v981 = vperm.slane %v326, 4
    %v982 = vperm.slane %v326, 5
    %v983 = vperm.slane %v326, 6
    %v984 = vperm.slane %v326, 7
    %1001 = vmatpush.bf16.msra.mxu0 %v823
    %1002 = vmatpush.bf16.msra.mxu0 %v807
    %1003 = vmatpush.bf16.msra.mxu0 %v791
    %1004 = vmatpush.bf16.msra.mxu0 %v775
    %1005 = vmatpush.bf16.msra.mxu0 %v759
    %1006 = vmatpush.bf16.msra.mxu0 %v743
    %1007 = vmatpush.bf16.msra.mxu0 %v727
    %1008 = vmatpush.bf16.msra.mxu0 %v711
    %1009 = vmatmul.bf16.gmra.mxu0 %v196
    %v1010 = vpop.f32.mrf.mxu0
    %v1011 = vadd.f32 %v969, %v1010
    %v1012 = vpop.f32.mrf.mxu0
    %1013 = vdwg.mxu0
    %1014 = vmatpush.bf16.msra.mxu0 %v824
    %1015 = vmatpush.bf16.msra.mxu0 %v808
    %1016 = vmatpush.bf16.msra.mxu0 %v792
    %1017 = vmatpush.bf16.msra.mxu0 %v776
    %1018 = vmatpush.bf16.msra.mxu0 %v760
    %1019 = vmatpush.bf16.msra.mxu0 %v744
    %1020 = vmatpush.bf16.msra.mxu0 %v728
    %1021 = vmatpush.bf16.msra.mxu0 %v712
    %1022 = vmatmul.bf16.gmra.mxu0 %v196
    %v1023 = vpop.f32.mrf.mxu0
    %v1024 = vadd.f32 %v970, %v1023
    %v1025 = vpop.f32.mrf.mxu0
    %1026 = vdwg.mxu0
    %1027 = vmatpush.bf16.msra.mxu0 %v825
    %1028 = vmatpush.bf16.msra.mxu0 %v809
    %1029 = vmatpush.bf16.msra.mxu0 %v793
    %1030 = vmatpush.bf16.msra.mxu0 %v777
    %1031 = vmatpush.bf16.msra.mxu0 %v761
    %1032 = vmatpush.bf16.msra.mxu0 %v745
    %1033 = vmatpush.bf16.msra.mxu0 %v729
    %1034 = vmatpush.bf16.msra.mxu0 %v713
    %1035 = vmatmul.bf16.gmra.mxu0 %v196
    %v1036 = vpop.f32.mrf.mxu0
    %v1037 = vadd.f32 %v971, %v1036
    %v1038 = vpop.f32.mrf.mxu0
    %1039 = vdwg.mxu0
    %1040 = vmatpush.bf16.msra.mxu0 %v826
    %1041 = vmatpush.bf16.msra.mxu0 %v810
    %1042 = vmatpush.bf16.msra.mxu0 %v794
    %1043 = vmatpush.bf16.msra.mxu0 %v778
    %1044 = vmatpush.bf16.msra.mxu0 %v762
    %1045 = vmatpush.bf16.msra.mxu0 %v746
    %1046 = vmatpush.bf16.msra.mxu0 %v730
    %1047 = vmatpush.bf16.msra.mxu0 %v714
    %1048 = vmatmul.bf16.gmra.mxu0 %v196
    %v1049 = vpop.f32.mrf.mxu0
    %v1050 = vadd.f32 %v972, %v1049
    %v1051 = vpop.f32.mrf.mxu0
    %1052 = vdwg.mxu0
    %1053 = vmatpush.bf16.msra.mxu0 %v827
    %1054 = vmatpush.bf16.msra.mxu0 %v811
    %1055 = vmatpush.bf16.msra.mxu0 %v795
    %1056 = vmatpush.bf16.msra.mxu0 %v779
    %1057 = vmatpush.bf16.msra.mxu0 %v763
    %1058 = vmatpush.bf16.msra.mxu0 %v747
    %1059 = vmatpush.bf16.msra.mxu0 %v731
    %1060 = vmatpush.bf16.msra.mxu0 %v715
    %1061 = vmatmul.bf16.gmra.mxu0 %v196
    %v1062 = vpop.f32.mrf.mxu0
    %v1063 = vadd.f32 %v973, %v1062
    %v1064 = vpop.f32.mrf.mxu0
    %1065 = vdwg.mxu0
    %1066 = vmatpush.bf16.msra.mxu0 %v828
    %1067 = vmatpush.bf16.msra.mxu0 %v812
    %1068 = vmatpush.bf16.msra.mxu0 %v796
    %1069 = vmatpush.bf16.msra.mxu0 %v780
    %1070 = vmatpush.bf16.msra.mxu0 %v764
    %1071 = vmatpush.bf16.msra.mxu0 %v748
    %1072 = vmatpush.bf16.msra.mxu0 %v732
    %1073 = vmatpush.bf16.msra.mxu0 %v716
    %1074 = vmatmul.bf16.gmra.mxu0 %v196
    %v1075 = vpop.f32.mrf.mxu0
    %v1076 = vadd.f32 %v974, %v1075
    %v1077 = vpop.f32.mrf.mxu0
    %1078 = vdwg.mxu0
    %1079 = vmatpush.bf16.msra.mxu0 %v829
    %1080 = vmatpush.bf16.msra.mxu0 %v813
    %1081 = vmatpush.bf16.msra.mxu0 %v797
    %1082 = vmatpush.bf16.msra.mxu0 %v781
    %1083 = vmatpush.bf16.msra.mxu0 %v765
    %1084 = vmatpush.bf16.msra.mxu0 %v749
    %1085 = vmatpush.bf16.msra.mxu0 %v733
    %1086 = vmatpush.bf16.msra.mxu0 %v717
    %1087 = vmatmul.bf16.gmra.mxu0 %v196
    %v1088 = vpop.f32.mrf.mxu0
    %v1089 = vadd.f32 %v975, %v1088
    %v1090 = vpop.f32.mrf.mxu0
    %1091 = vdwg.mxu0
    %1092 = vmatpush.bf16.msra.mxu0 %v830
    %1093 = vmatpush.bf16.msra.mxu0 %v814
    %1094 = vmatpush.bf16.msra.mxu0 %v798
    %1095 = vmatpush.bf16.msra.mxu0 %v782
    %1096 = vmatpush.bf16.msra.mxu0 %v766
    %1097 = vmatpush.bf16.msra.mxu0 %v750
    %1098 = vmatpush.bf16.msra.mxu0 %v734
    %1099 = vmatpush.bf16.msra.mxu0 %v718
    %1100 = vmatmul.bf16.gmra.mxu0 %v196
    %v1101 = vpop.f32.mrf.mxu0
    %v1102 = vadd.f32 %v976, %v1101
    %v1103 = vpop.f32.mrf.mxu0
    %1104 = vdwg.mxu0
    %1105 = vmatpush.bf16.msra.mxu0 %v831
    %1106 = vmatpush.bf16.msra.mxu0 %v815
    %1107 = vmatpush.bf16.msra.mxu0 %v799
    %1108 = vmatpush.bf16.msra.mxu0 %v783
    %1109 = vmatpush.bf16.msra.mxu0 %v767
    %1110 = vmatpush.bf16.msra.mxu0 %v751
    %1111 = vmatpush.bf16.msra.mxu0 %v735
    %1112 = vmatpush.bf16.msra.mxu0 %v719
    %1113 = vmatmul.bf16.gmra.mxu0 %v196
    %v1114 = vpop.f32.mrf.mxu0
    %v1115 = vadd.f32 %v977, %v1114
    %v1116 = vpop.f32.mrf.mxu0
    %1117 = vdwg.mxu0
    %1118 = vmatpush.bf16.msra.mxu0 %v832
    %1119 = vmatpush.bf16.msra.mxu0 %v816
    %1120 = vmatpush.bf16.msra.mxu0 %v800
    %1121 = vmatpush.bf16.msra.mxu0 %v784
    %1122 = vmatpush.bf16.msra.mxu0 %v768
    %1123 = vmatpush.bf16.msra.mxu0 %v752
    %1124 = vmatpush.bf16.msra.mxu0 %v736
    %1125 = vmatpush.bf16.msra.mxu0 %v720
    %1126 = vmatmul.bf16.gmra.mxu0 %v196
    %v1127 = vpop.f32.mrf.mxu0
    %v1128 = vadd.f32 %v978, %v1127
    %v1129 = vpop.f32.mrf.mxu0
    %1130 = vdwg.mxu0
    %1131 = vmatpush.bf16.msra.mxu0 %v833
    %1132 = vmatpush.bf16.msra.mxu0 %v817
    %1133 = vmatpush.bf16.msra.mxu0 %v801
    %1134 = vmatpush.bf16.msra.mxu0 %v785
    %1135 = vmatpush.bf16.msra.mxu0 %v769
    %1136 = vmatpush.bf16.msra.mxu0 %v753
    %1137 = vmatpush.bf16.msra.mxu0 %v737
    %1138 = vmatpush.bf16.msra.mxu0 %v721
    %1139 = vmatmul.bf16.gmra.mxu0 %v196
    %v1140 = vpop.f32.mrf.mxu0
    %v1141 = vadd.f32 %v979, %v1140
    %v1142 = vpop.f32.mrf.mxu0
    %1143 = vdwg.mxu0
    %1144 = vmatpush.bf16.msra.mxu0 %v834
    %1145 = vmatpush.bf16.msra.mxu0 %v818
    %1146 = vmatpush.bf16.msra.mxu0 %v802
    %1147 = vmatpush.bf16.msra.mxu0 %v786
    %1148 = vmatpush.bf16.msra.mxu0 %v770
    %1149 = vmatpush.bf16.msra.mxu0 %v754
    %1150 = vmatpush.bf16.msra.mxu0 %v738
    %1151 = vmatpush.bf16.msra.mxu0 %v722
    %1152 = vmatmul.bf16.gmra.mxu0 %v196
    %v1153 = vpop.f32.mrf.mxu0
    %v1154 = vadd.f32 %v980, %v1153
    %v1155 = vpop.f32.mrf.mxu0
    %1156 = vdwg.mxu0
    %1157 = vmatpush.bf16.msra.mxu0 %v835
    %1158 = vmatpush.bf16.msra.mxu0 %v819
    %1159 = vmatpush.bf16.msra.mxu0 %v803
    %1160 = vmatpush.bf16.msra.mxu0 %v787
    %1161 = vmatpush.bf16.msra.mxu0 %v771
    %1162 = vmatpush.bf16.msra.mxu0 %v755
    %1163 = vmatpush.bf16.msra.mxu0 %v739
    %1164 = vmatpush.bf16.msra.mxu0 %v723
    %1165 = vmatmul.bf16.gmra.mxu0 %v196
    %v1166 = vpop.f32.mrf.mxu0
    %v1167 = vadd.f32 %v981, %v1166
    %v1168 = vpop.f32.mrf.mxu0
    %1169 = vdwg.mxu0
    %1170 = vmatpush.bf16.msra.mxu0 %v836
    %1171 = vmatpush.bf16.msra.mxu0 %v820
    %1172 = vmatpush.bf16.msra.mxu0 %v804
    %1173 = vmatpush.bf16.msra.mxu0 %v788
    %1174 = vmatpush.bf16.msra.mxu0 %v772
    %1175 = vmatpush.bf16.msra.mxu0 %v756
    %1176 = vmatpush.bf16.msra.mxu0 %v740
    %1177 = vmatpush.bf16.msra.mxu0 %v724
    %1178 = vmatmul.bf16.gmra.mxu0 %v196
    %v1179 = vpop.f32.mrf.mxu0
    %v1180 = vadd.f32 %v982, %v1179
    %v1181 = vpop.f32.mrf.mxu0
    %1182 = vdwg.mxu0
    %1183 = vmatpush.bf16.msra.mxu0 %v837
    %1184 = vmatpush.bf16.msra.mxu0 %v821
    %1185 = vmatpush.bf16.msra.mxu0 %v805
    %1186 = vmatpush.bf16.msra.mxu0 %v789
    %1187 = vmatpush.bf16.msra.mxu0 %v773
    %1188 = vmatpush.bf16.msra.mxu0 %v757
    %1189 = vmatpush.bf16.msra.mxu0 %v741
    %1190 = vmatpush.bf16.msra.mxu0 %v725
    %1191 = vmatmul.bf16.gmra.mxu0 %v196
    %v1192 = vpop.f32.mrf.mxu0
    %v1193 = vadd.f32 %v983, %v1192
    %v1194 = vpop.f32.mrf.mxu0
    %1195 = vdwg.mxu0
    %1196 = vmatpush.bf16.msra.mxu0 %v838
    %1197 = vmatpush.bf16.msra.mxu0 %v822
    %1198 = vmatpush.bf16.msra.mxu0 %v806
    %1199 = vmatpush.bf16.msra.mxu0 %v790
    %1200 = vmatpush.bf16.msra.mxu0 %v774
    %1201 = vmatpush.bf16.msra.mxu0 %v758
    %1202 = vmatpush.bf16.msra.mxu0 %v742
    %1203 = vmatpush.bf16.msra.mxu0 %v726
    %1204 = vmatmul.bf16.gmra.mxu0 %v196
    %v1205 = vpop.f32.mrf.mxu0
    %v1206 = vadd.f32 %v984, %v1205
    %v1207 = vpop.f32.mrf.mxu0
    %1208 = vdwg.mxu0
    %v1225 = vrot.slane %v1024, 7
    %v1226 = vrot.slane %v1037, 6
    %v1227 = vrot.slane %v1050, 5
    %v1228 = vrot.slane %v1063, 4
    %v1229 = vrot.slane %v1076, 3
    %v1230 = vrot.slane %v1089, 2
    %v1231 = vrot.slane %v1102, 1
    %v1232 = vrot.slane %v1128, 7
    %v1233 = vrot.slane %v1141, 6
    %v1234 = vrot.slane %v1154, 5
    %v1235 = vrot.slane %v1167, 4
    %v1236 = vrot.slane %v1180, 3
    %v1237 = vrot.slane %v1193, 2
    %v1238 = vrot.slane %v1206, 1
    %vm1239 = vcmask 1040384
    %v1240 = vsel %vm1239, %v1011, %v1225
    %vm1241 = vcmask 1042434
    %v1242 = vsel %vm1241, %v1226, %v1227
    %vm1243 = vcmask 1041408
    %v1244 = vsel %vm1243, %v1240, %v1242
    %vm1245 = vcmask 1044484
    %v1246 = vsel %vm1245, %v1228, %v1229
    %vm1247 = vcmask 1046534
    %v1248 = vsel %vm1247, %v1230, %v1231
    %vm1249 = vcmask 1045508
    %v1250 = vsel %vm1249, %v1246, %v1248
    %vm1251 = vcmask 1043456
    %v1252 = vsel %vm1251, %v1244, %v1250
    %v1253 = vsel %vm1239, %v1115, %v1232
    %v1254 = vsel %vm1241, %v1233, %v1234
    %v1255 = vsel %vm1243, %v1253, %v1254
    %v1256 = vsel %vm1245, %v1235, %v1236
    %v1257 = vsel %vm1247, %v1237, %v1238
    %v1258 = vsel %vm1249, %v1256, %v1257
    %v1259 = vsel %vm1251, %v1255, %v1258
    %1262 = vst [vmem:[#allocation11] sm:$0xff] %v1252
    %1263 = vst [vmem:[#allocation11 + $0x8] sm:$0xff] %v1259
    // Predicated region
    $region50: #{tpu_custom_call.1} parent=1 // pred_check
      _
    $region51: #{tpu_custom_call.1} parent=1 // pred_check_branch
      %1265 = sbr.rel (0) target = $region53
    $region52: #{tpu_custom_call.1} parent=1 // pred_region
      %1267 = vsyncadd [#allocation4], 0
      %s1269 = sshll.u32 [#allocation11], 4
      %s1270 = int_to_ptr.vmem [resolvable:$true] %s1269
      %s1271 = sshll.u32 %s7, 4
      %s1272 = int_to_ptr.hbm [resolvable:$true] %s1271
      %1274 = dma.vmem_to_hbm [thread:$0]  %s1270, 256, %s1272, [#allocation4]
    $region53: #{tpu_custom_call.1} parent=1 // pred_fallthru
      _
    // Predicated region
    $region54: #{tpu_custom_call.1} parent=1 // pred_check
      _
    $region55: #{tpu_custom_call.1} parent=1 // pred_check_branch
      %1276 = sbr.rel (0) target = $region57
    $region56: #{tpu_custom_call.1} parent=1 // pred_region
      %1278 = dma.done [#allocation4], 256
    $region57: #{tpu_custom_call.1} parent=1 // pred_fallthru
      _
    %1279 = vsyncpa [#allocation3], 1
    %1280 = vsyncpa [#allocation6], 1
    %1281 = vsyncpa [#allocation9], 1
    %1282 = vsyncpa [#allocation4], 1

</llo_original>
